<compile_context>
chip_gen: v7x
topology: tpu7x:2x2x1
jax: 0.10.0
libtpu: 0.0.40
codegen_flags: <defaults>
</compile_context>

<pallas_src>
import functools

import jax
import jax.numpy as jnp
from jax import lax
from jax.experimental import pallas as pl
from jax.experimental.pallas import tpu as pltpu


def ffn_kernel(x_ref, w1_ref, b1_ref, w2_ref, b2_ref, w3_ref, b3_ref, o_ref,
               *, matmul_bf16):
    """Fused FFN tile with batch on the lane axis.

    x_ref : (bm, D)            input rows for this tile
    w1_ref: (16, D)   b1_ref: (16, 1)
    w2_ref: (32, 16)  b2_ref: (32, 1)
    w3_ref: (32, 1)   b3_ref: (1, 1)
    o_ref : (1, 1, bm)         lane-dense output tile
    """
    x = x_ref[...]                                              # (bm, D)
    w1 = w1_ref[...]                                            # (16, D)
    if matmul_bf16:
        x = x.astype(jnp.bfloat16)
        w1 = w1.astype(jnp.bfloat16)

    # fc1 + relu: contract D of (16, D) against D of (bm, D) -> (16, bm).
    h1 = lax.dot_general(
        w1, x,
        dimension_numbers=(((1,), (1,)), ((), ())),
        preferred_element_type=jnp.float32,
    ) + b1_ref[...]
    h1 = jnp.maximum(h1, 0.0)                                   # (16, bm) f32

    # fc2 + relu: (32, 16) @ (16, bm) -> (32, bm)
    w2 = w2_ref[...]
    lhs2, rhs2 = (w2, h1)
    if matmul_bf16:
        lhs2 = w2.astype(jnp.bfloat16)
        rhs2 = h1.astype(jnp.bfloat16)
    h2 = jnp.dot(lhs2, rhs2, preferred_element_type=jnp.float32) + b2_ref[...]
    h2 = jnp.maximum(h2, 0.0)                                   # (32, bm) f32

    # fc4 (out_dim = 1): VPU multiply + sublane reduction (skip the N=1 matmul).
    z = jnp.sum(h2 * w3_ref[...], axis=0, keepdims=True) + b3_ref[...]   # (1, bm)

    # softplus (matches torch: beta=1, threshold=20)
    sp = jnp.log1p(jnp.exp(jnp.minimum(z, 20.0)))
    out = jnp.where(z > 20.0, z, sp)                            # (1, bm)

    o_ref[0] = out                                              # lane-dense store


def _vmem_capacity_bytes():
    """Physical VMEM of this generation (fallback: v7x's 64 MiB, safe everywhere)."""
    try:
        info = pltpu.get_tpu_info()
        for attr in ("vmem_capacity_bytes", "vmem_size_bytes", "vmem_bytes"):
            cap = getattr(info, attr, None)
            if cap:
                return int(cap)
    except Exception:
        pass
    return 64 * 1024 * 1024


def _choose_block_m(batch, dim, vmem_cap, max_block_m=None):
    """Pick the batch tile from a VMEM byte budget (half of physical VMEM)."""
    if batch <= 128:
        # single block equal to the full (small) batch; no alignment needed
        return batch

    # resident bytes per batch row: x double-buffered (2*4*D) + output
    # double-buffered (2*4) + f32 intermediates h1/h2/z (4*49)
    per_row = 8 * dim + 8 + 4 * (16 + 32 + 1)
    budget = vmem_cap // 2                       # leave half of VMEM as headroom
    bm = budget // per_row
    bm = min(bm, 65536)                          # keep lane width / compile sane
    bm = min(bm, 128 * pl.cdiv(batch, 128))      # never bigger than the batch
    if batch >= 256:
        # ensure grid_m >= 2 so the "parallel" axis spans both v7x TensorCores
        bm = min(bm, 128 * pl.cdiv(pl.cdiv(batch, 2), 128))
    if max_block_m is not None:
        bm = min(bm, max_block_m)
    return max(128, (bm // 128) * 128)


def ffn_forward(x, params, *, max_block_m=None, matmul_bf16=False):
    """x: (B, D) float32. params: torch-layout w1(16,D), w2(32,16), w3(1,32),
    b1(16,), b2(32,), b3(1,). Returns (B, 1) float32."""
    B, D = x.shape
    w1 = params["w1"]
    w2 = params["w2"]
    b1 = params["b1"].reshape(-1, 1)        # (16, 1)
    b2 = params["b2"].reshape(-1, 1)        # (32, 1)
    w3 = params["w3"].reshape(-1, 1)        # (32, 1)
    b3 = params["b3"].reshape(1, 1)         # (1, 1)

    vmem_cap = _vmem_capacity_bytes()
    bm = _choose_block_m(B, D, vmem_cap, max_block_m)
    grid_m = pl.cdiv(B, bm)                 # ragged tail handled by a partial block

    # explicit scoped-VMEM limit matched to the tile footprint
    weight_bytes = 4 * (16 * D + 16 + 32 * 16 + 32 + 32 + 1)
    need = (2 * bm * D * 4                  # x tile, double-buffered
            + 2 * bm * 4                    # output slab, double-buffered
            + bm * 4 * (16 + 32 + 1)        # f32 intermediates h1/h2/z
            + 2 * weight_bytes              # resident weights (double-buffered)
            + (2 << 20))                    # compiler scratch slack
    vmem_limit = min(max(need, 32 * 1024 * 1024), int(vmem_cap * 0.9))

    cost = pl.CostEstimate(
        flops=2 * B * (16 * D + 16 * 32 + 32),
        transcendentals=2 * B,
        bytes_accessed=4 * (B * D + B) + weight_bytes,
    )

    rep = lambda arr: pl.BlockSpec(arr.shape, lambda i: (0, 0))  # VMEM-resident

    out = pl.pallas_call(
        functools.partial(ffn_kernel, matmul_bf16=matmul_bf16),
        out_shape=jax.ShapeDtypeStruct((grid_m, 1, bm), jnp.float32),
        grid=(grid_m,),
        in_specs=[
            pl.BlockSpec((bm, D), lambda i: (i, 0)),             # x tile
            rep(w1), rep(b1), rep(w2), rep(b2), rep(w3), rep(b3),
        ],
        out_specs=pl.BlockSpec((1, 1, bm), lambda i: (i, 0, 0)),  # lane-dense slab
        compiler_params=pltpu.CompilerParams(
            dimension_semantics=("parallel",),                    # megacore on v7x
            vmem_limit_bytes=int(vmem_limit),
        ),
        cost_estimate=cost,
    )(x, w1, b1, w2, b2, w3, b3)

    # (grid_m, 1, bm) slab -> (B, 1); lanes beyond B (partial last tile) dropped.
    return out.reshape(-1)[:B].reshape(B, 1)


def init_params(key, input_dim):
    """Mimics nn.Linear init: uniform(-1/sqrt(fan_in), 1/sqrt(fan_in)), torch layout."""
    ks = jax.random.split(key, 6)

    def lin(kw, kb, fan_in, fan_out):
        bound = 1.0 / jnp.sqrt(jnp.float32(fan_in))
        w = jax.random.uniform(kw, (fan_out, fan_in), jnp.float32, -bound, bound)
        b = jax.random.uniform(kb, (fan_out,), jnp.float32, -bound, bound)
        return w, b

    w1, b1 = lin(ks[0], ks[1], input_dim, 16)
    w2, b2 = lin(ks[2], ks[3], 16, 32)
    w3, b3 = lin(ks[4], ks[5], 32, 1)
    return {"w1": w1, "b1": b1, "w2": w2, "b2": b2, "w3": w3, "b3": b3}


def ffn_reference(x, p):
    h1 = jnp.maximum(x @ p["w1"].T + p["b1"], 0.0)
    h2 = jnp.maximum(h1 @ p["w2"].T + p["b2"], 0.0)
    z = h2 @ p["w3"].T + p["b3"]
    return jnp.where(z > 20.0, z, jnp.log1p(jnp.exp(jnp.minimum(z, 20.0))))


if __name__ == "__main__":
    key = jax.random.PRNGKey(0)
    kx, kp = jax.random.split(key)

    # Ragged batch (not a multiple of 128): exercises multi-step grid, the
    # grid_m >= 2 megacore split, and the un-padded partial trailing block.
    B, D = 300, 32
    x = jax.random.normal(kx, (B, D), jnp.float32)
    params = init_params(kp, D)

    out = jax.block_until_ready(ffn_forward(x, params))
    ref = ffn_reference(x, params)
    assert out.shape == (B, 1), out.shape
    assert jnp.allclose(out, ref, atol=1e-5, rtol=1e-4), float(
        jnp.max(jnp.abs(out - ref)))

    # Tiny batch (< 128): single full-array block, grid_m == 1.
    x2 = jax.random.normal(jax.random.PRNGKey(1), (64, D), jnp.float32)
    out2 = jax.block_until_ready(ffn_forward(x2, params))
    ref2 = ffn_reference(x2, params)
    assert out2.shape == (64, 1)
    assert jnp.allclose(out2, ref2, atol=1e-5, rtol=1e-4), float(
        jnp.max(jnp.abs(out2 - ref2)))

    # bf16 MXU-operand variant (v5e relief); accumulation stays f32.
    out3 = jax.block_until_ready(ffn_forward(x, params, matmul_bf16=True))
    assert jnp.allclose(out3, ref, atol=5e-2, rtol=5e-2), float(
        jnp.max(jnp.abs(out3 - ref)))

    print("KERNEL_OK")
</pallas_src>

<mosaic_0001>
module attributes {stable_mosaic.version = 11 : i64} {
  func.func @ffn_kernel(%arg0: i32, %arg1: memref<256x32xf32, #tpu.memory_space<vmem>>, %arg2: memref<16x32xf32, #tpu.memory_space<vmem>>, %arg3: memref<16x1xf32, #tpu.memory_space<vmem>>, %arg4: memref<32x16xf32, #tpu.memory_space<vmem>>, %arg5: memref<32x1xf32, #tpu.memory_space<vmem>>, %arg6: memref<32x1xf32, #tpu.memory_space<vmem>>, %arg7: memref<1x1xf32, #tpu.memory_space<vmem>>, %arg8: memref<1x1x256xf32, #tpu.memory_space<vmem>>) attributes {dimension_semantics = [#tpu.dimension_semantics<parallel>], iteration_bounds = array<i64: 2>, scalar_prefetch = 0 : i64, scratch_operands = 0 : i64, tpu.core_type = #tpu.core_type<tc>, window_params = [{transform_indices = @transform_0, window_bounds = array<i64: 256, 32>}, {pipeline_mode = #tpu.pipeline_mode<synchronous>, transform_indices = @transform_1, window_bounds = array<i64: 16, 32>}, {pipeline_mode = #tpu.pipeline_mode<synchronous>, transform_indices = @transform_2, window_bounds = array<i64: 16, 1>}, {pipeline_mode = #tpu.pipeline_mode<synchronous>, transform_indices = @transform_3, window_bounds = array<i64: 32, 16>}, {pipeline_mode = #tpu.pipeline_mode<synchronous>, transform_indices = @transform_4, window_bounds = array<i64: 32, 1>}, {pipeline_mode = #tpu.pipeline_mode<synchronous>, transform_indices = @transform_5, window_bounds = array<i64: 32, 1>}, {pipeline_mode = #tpu.pipeline_mode<synchronous>, transform_indices = @transform_6, window_bounds = array<i64: 1, 1>}, {transform_indices = @transform_7, window_bounds = array<i64: 1, 1, 256>}]} {
    %c0 = arith.constant 0 : index
    %c0_0 = arith.constant 0 : index
    %0 = vector.load %arg1[%c0, %c0_0] : memref<256x32xf32, #tpu.memory_space<vmem>>, vector<256x32xf32>
    %c0_1 = arith.constant 0 : index
    %c0_2 = arith.constant 0 : index
    %1 = vector.load %arg2[%c0_1, %c0_2] : memref<16x32xf32, #tpu.memory_space<vmem>>, vector<16x32xf32>
    %cst = arith.constant dense<0.000000e+00> : vector<16x256xf32>
    %2 = tpu.matmul %1, %0, %cst {dimension_numbers = #tpu.dot_dimension_numbers<[1], [1], [0], [0], [0, 0, 1, 0], [], []>} : vector<16x32xf32>, vector<256x32xf32>, vector<16x256xf32> -> vector<16x256xf32>
    %c0_3 = arith.constant 0 : index
    %c0_4 = arith.constant 0 : index
    %3 = vector.load %arg3[%c0_3, %c0_4] : memref<16x1xf32, #tpu.memory_space<vmem>>, vector<16x1xf32>
    %4 = vector.broadcast %3 : vector<16x1xf32> to vector<16x256xf32>
    %5 = arith.addf %2, %4 : vector<16x256xf32>
    %cst_5 = arith.constant 0.000000e+00 : f32
    %6 = vector.broadcast %cst_5 : f32 to vector<16x256xf32>
    %7 = arith.maximumf %5, %6 : vector<16x256xf32>
    %c0_6 = arith.constant 0 : index
    %c0_7 = arith.constant 0 : index
    %8 = vector.load %arg4[%c0_6, %c0_7] : memref<32x16xf32, #tpu.memory_space<vmem>>, vector<32x16xf32>
    %cst_8 = arith.constant dense<0.000000e+00> : vector<32x256xf32>
    %9 = tpu.matmul %8, %7, %cst_8 {dimension_numbers = #tpu.dot_dimension_numbers<[1], [0], [0], [1], [0, 0, 1, 1], [], []>} : vector<32x16xf32>, vector<16x256xf32>, vector<32x256xf32> -> vector<32x256xf32>
    %c0_9 = arith.constant 0 : index
    %c0_10 = arith.constant 0 : index
    %10 = vector.load %arg5[%c0_9, %c0_10] : memref<32x1xf32, #tpu.memory_space<vmem>>, vector<32x1xf32>
    %11 = vector.broadcast %10 : vector<32x1xf32> to vector<32x256xf32>
    %12 = arith.addf %9, %11 : vector<32x256xf32>
    %cst_11 = arith.constant 0.000000e+00 : f32
    %13 = vector.broadcast %cst_11 : f32 to vector<32x256xf32>
    %14 = arith.maximumf %12, %13 : vector<32x256xf32>
    %c0_12 = arith.constant 0 : index
    %c0_13 = arith.constant 0 : index
    %15 = vector.load %arg6[%c0_12, %c0_13] : memref<32x1xf32, #tpu.memory_space<vmem>>, vector<32x1xf32>
    %16 = vector.broadcast %15 : vector<32x1xf32> to vector<32x256xf32>
    %17 = arith.mulf %14, %16 : vector<32x256xf32>
    %cst_14 = arith.constant dense<0.000000e+00> : vector<256xf32>
    %18 = vector.multi_reduction <add>, %17, %cst_14 [0] : vector<32x256xf32> to vector<256xf32>
    %19 = vector.shape_cast %18 : vector<256xf32> to vector<1x256xf32>
    %c0_15 = arith.constant 0 : index
    %c0_16 = arith.constant 0 : index
    %20 = vector.load %arg7[%c0_15, %c0_16] : memref<1x1xf32, #tpu.memory_space<vmem>>, vector<1x1xf32>
    %21 = vector.broadcast %20 : vector<1x1xf32> to vector<1x256xf32>
    %22 = arith.addf %19, %21 : vector<1x256xf32>
    %cst_17 = arith.constant 2.000000e+01 : f32
    %23 = vector.broadcast %cst_17 : f32 to vector<1x256xf32>
    %24 = arith.minimumf %22, %23 : vector<1x256xf32>
    %25 = math.exp %24 : vector<1x256xf32>
    %26 = math.log1p %25 : vector<1x256xf32>
    %cst_18 = arith.constant 2.000000e+01 : f32
    %27 = vector.broadcast %cst_18 : f32 to vector<1x256xf32>
    %28 = arith.cmpf ogt, %22, %27 : vector<1x256xf32>
    %29 = arith.select %28, %22, %26 : vector<1x256xi1>, vector<1x256xf32>
    %c0_19 = arith.constant 0 : index
    %c0_20 = arith.constant 0 : index
    %c0_21 = arith.constant 0 : index
    %30 = vector.load %arg8[%c0_19, %c0_20, %c0_21] : memref<1x1x256xf32, #tpu.memory_space<vmem>>, vector<1x1x256xf32>
    %31 = vector.shape_cast %30 : vector<1x1x256xf32> to vector<1x256xf32>
    %32 = vector.shape_cast %29 : vector<1x256xf32> to vector<1x1x256xf32>
    tpu.vector_store %arg8[%c0_19, %c0_20, %c0_21], %32 {strides = array<i32>} : memref<1x1x256xf32, #tpu.memory_space<vmem>>, vector<1x1x256xf32>,
    return
  }
  func.func @transform_0(%arg0: i32) -> (i32, i32) {
    %c0_i32 = arith.constant 0 : i32
    %c0_i32_0 = arith.constant 0 : i32
    return %arg0, %c0_i32 : i32, i32
  }
  func.func @transform_1(%arg0: i32) -> (i32, i32) {
    %c0_i32 = arith.constant 0 : i32
    %c0_i32_0 = arith.constant 0 : i32
    %c0_i32_1 = arith.constant 0 : i32
    return %c0_i32, %c0_i32_0 : i32, i32
  }
  func.func @transform_2(%arg0: i32) -> (i32, i32) {
    %c0_i32 = arith.constant 0 : i32
    %c0_i32_0 = arith.constant 0 : i32
    %c0_i32_1 = arith.constant 0 : i32
    return %c0_i32, %c0_i32_0 : i32, i32
  }
  func.func @transform_3(%arg0: i32) -> (i32, i32) {
    %c0_i32 = arith.constant 0 : i32
    %c0_i32_0 = arith.constant 0 : i32
    %c0_i32_1 = arith.constant 0 : i32
    return %c0_i32, %c0_i32_0 : i32, i32
  }
  func.func @transform_4(%arg0: i32) -> (i32, i32) {
    %c0_i32 = arith.constant 0 : i32
    %c0_i32_0 = arith.constant 0 : i32
    %c0_i32_1 = arith.constant 0 : i32
    return %c0_i32, %c0_i32_0 : i32, i32
  }
  func.func @transform_5(%arg0: i32) -> (i32, i32) {
    %c0_i32 = arith.constant 0 : i32
    %c0_i32_0 = arith.constant 0 : i32
    %c0_i32_1 = arith.constant 0 : i32
    return %c0_i32, %c0_i32_0 : i32, i32
  }
  func.func @transform_6(%arg0: i32) -> (i32, i32) {
    %c0_i32 = arith.constant 0 : i32
    %c0_i32_0 = arith.constant 0 : i32
    %c0_i32_1 = arith.constant 0 : i32
    return %c0_i32, %c0_i32_0 : i32, i32
  }
  func.func @transform_7(%arg0: i32) -> (i32, i32, i32) {
    %c0_i32 = arith.constant 0 : i32
    %c0_i32_0 = arith.constant 0 : i32
    %c0_i32_1 = arith.constant 0 : i32
    return %arg0, %c0_i32, %c0_i32_0 : i32, i32, i32
  }
}

</mosaic_0001>

<llo_original>
// kernel: tpu_custom_call.1
$region0: #{tpu_custom_call.1}
  #allocation0 [shape = 'u32[]', space=smem, size = 0x4, offset = 0x4, fixed_abs, tag = 'smem constant byte address 0x4 - core index']
  #allocation1 [shape = 'u32[144,128]{1,0:T(1,128)}', space=vmem, size = 0x12000, scoped, tag = 'internal scratch']
  #allocation2 [shape = 'f32[1,1]{1,0:T(1,128)S(1)}', space=vmem, size = 0x200, scoped, tag = 'scoped memory for tpu_custom_call.1']
  %s0 = inlined_call_operand.vmem [shape: f32[300,32], index: 0, kind: input, shape index: {}]
  %s1 = inlined_call_operand.vmem [shape: f32[16,32], index: 1, kind: input, shape index: {}]
  %s2 = inlined_call_operand.vmem [shape: f32[16,1], index: 2, kind: input, shape index: {}]
  %s3 = inlined_call_operand.vmem [shape: f32[32,16], index: 3, kind: input, shape index: {}]
  %s4 = inlined_call_operand.vmem [shape: f32[32,1], index: 4, kind: input, shape index: {}]
  %s5 = inlined_call_operand.vmem [shape: f32[32,1], index: 5, kind: input, shape index: {}]
  %s6 = inlined_call_operand.<no memory space> [shape: f32[1,1], index: 6, kind: input, shape index: {}]
  %s7 = inlined_call_operand.hbm [shape: f32[2,1,256], index: 7, kind: output, shape index: {}]
  %s8 = sld [smem:[#allocation0]]
  $region61: #{tpu_custom_call.1} parent=0
    _
  %s10 = ssub.s32 1, %s8
  %s11 = scalar_select 0, %s10, %s8
  %v12 = vstv %s6
  %13 = vst [vmem:[#allocation2] sm:$0x1] %v12
  $region1: #{tpu_custom_call.1} parent=0
    #allocation3 [shape = 'u8[2048]{0}', space=vmem, size = 0x800, scoped, tag = 'output window, operand 0']
    #allocation4 [shape = 's32[2]{0}', space=sflag, size = 0x8, scoped, tag = 'scoped memory for tpu_custom_call.1']
    %14 = vsyncpa [#allocation4], 0
    %s15 = scalar_lea.sflag [#allocation4], 1
    %16 = vsyncpa %s15, 0
    loop: start=0, step=1, limit=4
    $region2: #{tpu_custom_call.1} parent=1 // loop_pre_header
      _
    $region3: #{tpu_custom_call.1} parent=1 // loop_header
      %s18 = sphi 0, %s22
      %p19 = scmp.ge.s32.totalorder %s18, 4
      %s28 = sphi 0, %s30
      %s31 = sphi 0, %s28
      %s32 = sphi 0, %s31
      %s48 = sphi 0, %s32
      %s52 = sphi 0, %s52
      %s54 = sphi 0, %s52
      %s55 = sphi 0, %s54
      %s69 = sphi 0, %s55
      %s73 = sphi 0, %s73
      %s75 = sphi 0, %s73
      %s76 = sphi 0, %s75
      %s90 = sphi 0, %s76
      %s94 = sphi 0, %s94
      %s96 = sphi 0, %s94
      %s97 = sphi 0, %s96
      %s111 = sphi 0, %s97
      %s115 = sphi 0, %s115
      %s117 = sphi 0, %s115
      %s118 = sphi 0, %s117
      %s132 = sphi 0, %s118
      %s136 = sphi 0, %s136
      %s138 = sphi 0, %s136
      %s139 = sphi 0, %s138
      %s153 = sphi 0, %s139
      %s157 = sphi 0, %s157
      %s159 = sphi 0, %s157
      %s160 = sphi 0, %s159
      %s174 = sphi 0, %s160
      %s180 = sphi 0, %s182
      %s183 = sphi 0, %s180
      %s184 = sphi 0, %s183
      %s200 = sphi 0, %s184
    $region4: #{tpu_custom_call.1} parent=1 // loop_header_branch
      %21 = sbr.rel (%p19) target = $region8
    $region5: #{tpu_custom_call.1} parent=1 // loop_body
      %s23 = ssub.s32 %s18, 1
      %s24 = ssub.s32 %s18, 2
      %s25 = sadd.s32 %s18, 1
      %s26 = ssub.s32 %s18, %s25
      %p27 = scmp.eq.s32.totalorder %s26, 0
      %s29 = sadd.s32 %s28, 1
      %s30 = scalar_select %p27, %s28, %s29
      %p33 = pneg %p27
      %p34 = scmp.eq.s32.totalorder %s18, 1
      %p35 = por %p33, %p34
      %p36 = scmp.ne.s32.totalorder %s28, %s31
      %p37 = scmp.eq.s32.totalorder %s18, 0
      %p38 = por %p36, %p37
      %p39 = scmp.ne.s32.totalorder %s28, %s31
      %p40 = scmp.eq.s32.totalorder %s23, 1
      %p41 = por %p39, %p40
      %p42 = scmp.ne.s32.totalorder %s31, %s32
      %p43 = scmp.eq.s32.totalorder %s23, 0
      %p44 = por %p42, %p43
      %p45 = scmp.ne.s32.totalorder %s31, %s32
      %p46 = scmp.eq.s32.totalorder %s24, 1
      %p47 = por %p45, %p46
      %p49 = scmp.ne.s32.totalorder %s32, %s48
      %p50 = scmp.eq.s32.totalorder %s24, 0
      %p51 = por %p49, %p50
      %s53 = sadd.s32 %s52, 1
      %p56 = scmp.eq.s32.totalorder %s18, 1
      %p57 = scmp.ne.s32.totalorder %s52, %s54
      %p58 = scmp.eq.s32.totalorder %s18, 0
      %p59 = por %p57, %p58
      %p60 = scmp.ne.s32.totalorder %s52, %s54
      %p61 = scmp.eq.s32.totalorder %s23, 1
      %p62 = por %p60, %p61
      %p63 = scmp.ne.s32.totalorder %s54, %s55
      %p64 = scmp.eq.s32.totalorder %s23, 0
      %p65 = por %p63, %p64
      %p66 = scmp.ne.s32.totalorder %s54, %s55
      %p67 = scmp.eq.s32.totalorder %s24, 1
      %p68 = por %p66, %p67
      %p70 = scmp.ne.s32.totalorder %s55, %s69
      %p71 = scmp.eq.s32.totalorder %s24, 0
      %p72 = por %p70, %p71
      %s74 = sadd.s32 %s73, 1
      %p77 = scmp.eq.s32.totalorder %s18, 1
      %p78 = scmp.ne.s32.totalorder %s73, %s75
      %p79 = scmp.eq.s32.totalorder %s18, 0
      %p80 = por %p78, %p79
      %p81 = scmp.ne.s32.totalorder %s73, %s75
      %p82 = scmp.eq.s32.totalorder %s23, 1
      %p83 = por %p81, %p82
      %p84 = scmp.ne.s32.totalorder %s75, %s76
      %p85 = scmp.eq.s32.totalorder %s23, 0
      %p86 = por %p84, %p85
      %p87 = scmp.ne.s32.totalorder %s75, %s76
      %p88 = scmp.eq.s32.totalorder %s24, 1
      %p89 = por %p87, %p88
      %p91 = scmp.ne.s32.totalorder %s76, %s90
      %p92 = scmp.eq.s32.totalorder %s24, 0
      %p93 = por %p91, %p92
      %s95 = sadd.s32 %s94, 1
      %p98 = scmp.eq.s32.totalorder %s18, 1
      %p99 = scmp.ne.s32.totalorder %s94, %s96
      %p100 = scmp.eq.s32.totalorder %s18, 0
      %p101 = por %p99, %p100
      %p102 = scmp.ne.s32.totalorder %s94, %s96
      %p103 = scmp.eq.s32.totalorder %s23, 1
      %p104 = por %p102, %p103
      %p105 = scmp.ne.s32.totalorder %s96, %s97
      %p106 = scmp.eq.s32.totalorder %s23, 0
      %p107 = por %p105, %p106
      %p108 = scmp.ne.s32.totalorder %s96, %s97
      %p109 = scmp.eq.s32.totalorder %s24, 1
      %p110 = por %p108, %p109
      %p112 = scmp.ne.s32.totalorder %s97, %s111
      %p113 = scmp.eq.s32.totalorder %s24, 0
      %p114 = por %p112, %p113
      %s116 = sadd.s32 %s115, 1
      %p119 = scmp.eq.s32.totalorder %s18, 1
      %p120 = scmp.ne.s32.totalorder %s115, %s117
      %p121 = scmp.eq.s32.totalorder %s18, 0
      %p122 = por %p120, %p121
      %p123 = scmp.ne.s32.totalorder %s115, %s117
      %p124 = scmp.eq.s32.totalorder %s23, 1
      %p125 = por %p123, %p124
      %p126 = scmp.ne.s32.totalorder %s117, %s118
      %p127 = scmp.eq.s32.totalorder %s23, 0
      %p128 = por %p126, %p127
      %p129 = scmp.ne.s32.totalorder %s117, %s118
      %p130 = scmp.eq.s32.totalorder %s24, 1
      %p131 = por %p129, %p130
      %p133 = scmp.ne.s32.totalorder %s118, %s132
      %p134 = scmp.eq.s32.totalorder %s24, 0
      %p135 = por %p133, %p134
      %s137 = sadd.s32 %s136, 1
      %p140 = scmp.eq.s32.totalorder %s18, 1
      %p141 = scmp.ne.s32.totalorder %s136, %s138
      %p142 = scmp.eq.s32.totalorder %s18, 0
      %p143 = por %p141, %p142
      %p144 = scmp.ne.s32.totalorder %s136, %s138
      %p145 = scmp.eq.s32.totalorder %s23, 1
      %p146 = por %p144, %p145
      %p147 = scmp.ne.s32.totalorder %s138, %s139
      %p148 = scmp.eq.s32.totalorder %s23, 0
      %p149 = por %p147, %p148
      %p150 = scmp.ne.s32.totalorder %s138, %s139
      %p151 = scmp.eq.s32.totalorder %s24, 1
      %p152 = por %p150, %p151
      %p154 = scmp.ne.s32.totalorder %s139, %s153
      %p155 = scmp.eq.s32.totalorder %s24, 0
      %p156 = por %p154, %p155
      %s158 = sadd.s32 %s157, 1
      %p161 = scmp.eq.s32.totalorder %s18, 1
      %p162 = scmp.ne.s32.totalorder %s157, %s159
      %p163 = scmp.eq.s32.totalorder %s18, 0
      %p164 = por %p162, %p163
      %p165 = scmp.ne.s32.totalorder %s157, %s159
      %p166 = scmp.eq.s32.totalorder %s23, 1
      %p167 = por %p165, %p166
      %p168 = scmp.ne.s32.totalorder %s159, %s160
      %p169 = scmp.eq.s32.totalorder %s23, 0
      %p170 = por %p168, %p169
      %p171 = scmp.ne.s32.totalorder %s159, %s160
      %p172 = scmp.eq.s32.totalorder %s24, 1
      %p173 = por %p171, %p172
      %p175 = scmp.ne.s32.totalorder %s160, %s174
      %p176 = scmp.eq.s32.totalorder %s24, 0
      %p177 = por %p175, %p176
      %s178 = ssub.s32 %s18, %s25
      %p179 = scmp.eq.s32.totalorder %s178, 0
      %s181 = sadd.s32 %s180, 1
      %s182 = scalar_select %p179, %s180, %s181
      %p185 = pneg %p179
      %p186 = scmp.eq.s32.totalorder %s18, 1
      %p187 = por %p185, %p186
      %p188 = scmp.ne.s32.totalorder %s180, %s183
      %p189 = scmp.eq.s32.totalorder %s18, 0
      %p190 = por %p188, %p189
      %p191 = scmp.ne.s32.totalorder %s180, %s183
      %p192 = scmp.eq.s32.totalorder %s23, 1
      %p193 = por %p191, %p192
      %p194 = scmp.ne.s32.totalorder %s183, %s184
      %p195 = scmp.eq.s32.totalorder %s23, 0
      %p196 = por %p194, %p195
      %p197 = scmp.ne.s32.totalorder %s183, %s184
      %p198 = scmp.eq.s32.totalorder %s24, 1
      %p199 = por %p197, %p198
      %p201 = scmp.ne.s32.totalorder %s184, %s200
      %p202 = scmp.eq.s32.totalorder %s24, 0
      %p203 = por %p201, %p202
      %p204 = scmp.le.s32.totalorder 1, %s18
      %p205 = scmp.lt.s32.totalorder %s18, 3
      %p206 = pnand %p204, %p205
      %p207 = pneg %p206
      // Predicated region
      $region9: #{tpu_custom_call.1} parent=5 // pred_check
        _
      $region10: #{tpu_custom_call.1} parent=5 // pred_check_branch
        %209 = sbr.rel (%p206) target = $region12
      $region11: #{tpu_custom_call.1} parent=5 // pred_region
        %s210 = ssub.s32 %s18, 1
        // Predicated region
        $region13: #{tpu_custom_call.1} parent=11 // pred_check
          %p211 = pneg %p65
        $region14: #{tpu_custom_call.1} parent=11 // pred_check_branch
          %213 = sbr.rel (%p211) target = $region16
        $region15: #{tpu_custom_call.1} parent=11 // pred_region
          _
        $region16: #{tpu_custom_call.1} parent=11 // pred_fallthru
          _
        // Predicated region
        $region17: #{tpu_custom_call.1} parent=11 // pred_check
          %p214 = pneg %p86
        $region18: #{tpu_custom_call.1} parent=11 // pred_check_branch
          %216 = sbr.rel (%p214) target = $region20
        $region19: #{tpu_custom_call.1} parent=11 // pred_region
          _
        $region20: #{tpu_custom_call.1} parent=11 // pred_fallthru
          _
        // Predicated region
        $region21: #{tpu_custom_call.1} parent=11 // pred_check
          %p217 = pneg %p107
        $region22: #{tpu_custom_call.1} parent=11 // pred_check_branch
          %219 = sbr.rel (%p217) target = $region24
        $region23: #{tpu_custom_call.1} parent=11 // pred_region
          _
        $region24: #{tpu_custom_call.1} parent=11 // pred_fallthru
          _
        // Predicated region
        $region25: #{tpu_custom_call.1} parent=11 // pred_check
          %p220 = pneg %p128
        $region26: #{tpu_custom_call.1} parent=11 // pred_check_branch
          %222 = sbr.rel (%p220) target = $region28
        $region27: #{tpu_custom_call.1} parent=11 // pred_region
          _
        $region28: #{tpu_custom_call.1} parent=11 // pred_fallthru
          _
        // Predicated region
        $region29: #{tpu_custom_call.1} parent=11 // pred_check
          %p223 = pneg %p149
        $region30: #{tpu_custom_call.1} parent=11 // pred_check_branch
          %225 = sbr.rel (%p223) target = $region32
        $region31: #{tpu_custom_call.1} parent=11 // pred_region
          _
        $region32: #{tpu_custom_call.1} parent=11 // pred_fallthru
          _
        // Predicated region
        $region33: #{tpu_custom_call.1} parent=11 // pred_check
          %p226 = pneg %p170
        $region34: #{tpu_custom_call.1} parent=11 // pred_check_branch
          %228 = sbr.rel (%p226) target = $region36
        $region35: #{tpu_custom_call.1} parent=11 // pred_region
          _
        $region36: #{tpu_custom_call.1} parent=11 // pred_fallthru
          _
      $region12: #{tpu_custom_call.1} parent=5 // pred_fallthru
        _
      %p229 = scmp.lt.s32.totalorder %s18, 2
      // Predicated region
      $region37: #{tpu_custom_call.1} parent=5 // pred_check
        %p230 = pneg %p229
      $region38: #{tpu_custom_call.1} parent=5 // pred_check_branch
        %232 = sbr.rel (%p230) target = $region40
      $region39: #{tpu_custom_call.1} parent=5 // pred_region
        // Predicated region
        $region41: #{tpu_custom_call.1} parent=39 // pred_check
          %p233 = pneg %p38
        $region42: #{tpu_custom_call.1} parent=39 // pred_check_branch
          %235 = sbr.rel (%p233) target = $region44
        $region43: #{tpu_custom_call.1} parent=39 // pred_region
          %s236 = smul.u32 32, %s18
          %s237 = ssub.s32 38, %s236
          %p238 = scmp.lt.s32.totalorder %s237, 32
          %s239 = scalar_select %p238, %s237, 32
          %s240 = smul.u32 128, %s239
          %p241 = scmp.lt.s32.totalorder %s236, 37
          %s242 = scalar_select %p241, %s236, 37
          %s243 = smul.addr %s242, 8
          %s244 = scalar_lea.vmem %s0, %s243
          %s245 = smul.u32 32, %s18
          %s246 = ssub.s32 38, %s245
          %p247 = scmp.lt.s32.totalorder %s246, 32
          %s248 = scalar_select %p247, %s246, 32
          %s249 = smul.u32 128, %s248
        $region44: #{tpu_custom_call.1} parent=39 // pred_fallthru
          _
      $region40: #{tpu_custom_call.1} parent=5 // pred_fallthru
        _
      %p250 = scmp.le.s32.totalorder 1, %s18
      %p251 = scmp.lt.s32.totalorder %s18, 3
      %p252 = pnand %p250, %p251
      %p253 = pneg %p252
      // Predicated region
      $region45: #{tpu_custom_call.1} parent=5 // pred_check
        _
      $region46: #{tpu_custom_call.1} parent=5 // pred_check_branch
        %255 = sbr.rel (%p252) target = $region48
      $region47: #{tpu_custom_call.1} parent=5 // pred_region
        %s256 = ssub.s32 %s18, 1
        %s257 = smul.u32 32, %s23
        %s258 = ssub.s32 38, %s257
        %p259 = scmp.lt.s32.totalorder %s258, 32
        %s260 = scalar_select %p259, %s258, 32
        %s261 = smul.u32 128, %s260
        %p262 = scmp.lt.s32.totalorder %s257, 37
        %s263 = scalar_select %p262, %s257, 37
        %s264 = smul.addr %s263, 8
        %s265 = scalar_lea.vmem %s0, %s264
        %p266 = pneg %p44
        %p267 = pneg %p41
        %p268 = pneg %p65
        %p269 = pneg %p62
        %p270 = pneg %p86
        %p271 = pneg %p83
        %p272 = pneg %p107
        %p273 = pneg %p104
        %p274 = pneg %p128
        %p275 = pneg %p125
        %p276 = pneg %p149
        %p277 = pneg %p146
        %p278 = pneg %p170
        %p279 = pneg %p167
        %p280 = pneg %p196
        %p281 = pneg %p193
        %s282 = sand.u32 %s183, 1
        %s283 = scalar_lea.sflag [#allocation4], %s282
        %s284 = sand.u32 %s183, 1
        %s285 = smul.addr %s284, 2
        %s286 = scalar_lea.vmem [#allocation3], %s285
        %s287 = smul.u32 32, %s23
        %s288 = ssub.s32 38, %s287
        %p289 = scmp.lt.s32.totalorder %s288, 32
        %s290 = scalar_select %p289, %s288, 32
        %s291 = smul.u32 128, %s290
        %p292 = scmp.lt.s32.totalorder %s287, 37
        %s293 = scalar_select %p292, %s287, 37
        %s294 = smul.addr %s293, 8
        %s295 = scalar_lea.vmem %s0, %s294
        %s296 = smul.u32 32, %s23
        %s297 = ssub.s32 38, %s296
        %p298 = scmp.lt.s32.totalorder %s297, 32
        %s299 = scalar_select %p298, %s297, 32
        %s300 = smul.u32 128, %s299
        %v301 = vld [vmem:[%s295] sm:$0xff]
        %v302 = vld [vmem:[%s295 + $0x8] sm:$0xff]
        %v303 = vld [vmem:[%s295 + $0x10] sm:$0xff]
        %v304 = vld [vmem:[%s295 + $0x18] sm:$0xff]
        %v305 = vld [vmem:[%s295 + $0x20] sm:$0xff]
        %v306 = vld [vmem:[%s295 + $0x28] sm:$0xff]
        %v307 = vld [vmem:[%s295 + $0x30] sm:$0xff]
        %v308 = vld [vmem:[%s295 + $0x38] sm:$0xff]
        %v309 = vld [vmem:[%s295 + $0x40] sm:$0xff]
        %v310 = vld [vmem:[%s295 + $0x48] sm:$0xff]
        %v311 = vld [vmem:[%s295 + $0x50] sm:$0xff]
        %v312 = vld [vmem:[%s295 + $0x58] sm:$0xff]
        %v313 = vld [vmem:[%s295 + $0x60] sm:$0xff]
        %v314 = vld [vmem:[%s295 + $0x68] sm:$0xff]
        %v315 = vld [vmem:[%s295 + $0x70] sm:$0xff]
        %v316 = vld [vmem:[%s295 + $0x78] sm:$0xff]
        %v317 = vld [vmem:[%s295 + $0x80] sm:$0xff]
        %v318 = vld [vmem:[%s295 + $0x88] sm:$0xff]
        %v319 = vld [vmem:[%s295 + $0x90] sm:$0xff]
        %v320 = vld [vmem:[%s295 + $0x98] sm:$0xff]
        %v321 = vld [vmem:[%s295 + $0xa0] sm:$0xff]
        %v322 = vld [vmem:[%s295 + $0xa8] sm:$0xff]
        %v323 = vld [vmem:[%s295 + $0xb0] sm:$0xff]
        %v324 = vld [vmem:[%s295 + $0xb8] sm:$0xff]
        %v325 = vld [vmem:[%s295 + $0xc0] sm:$0xff]
        %v326 = vld [vmem:[%s295 + $0xc8] sm:$0xff]
        %v327 = vld [vmem:[%s295 + $0xd0] sm:$0xff]
        %v328 = vld [vmem:[%s295 + $0xd8] sm:$0xff]
        %v329 = vld [vmem:[%s295 + $0xe0] sm:$0xff]
        %v330 = vld [vmem:[%s295 + $0xe8] sm:$0xff]
        %v331 = vld [vmem:[%s295 + $0xf0] sm:$0xff]
        %v332 = vld [vmem:[%s295 + $0xf8] sm:$0xff]
        %v333 = vld [vmem:[%s1] sm:$0xff]
        %v334 = vld [vmem:[%s1 + $0x8] sm:$0xff]
        %v335 = vld [vmem:[%s2] sm:$0xff]
        %v336 = vld [vmem:[%s2 + $0x8] sm:$0xff]
        %338 = vset.pattern.permute.xlu0 0
        %339 = vperm.xlu0 %338, %v335
        %v340 = vpop.permute.xlu0 %339
        %343 = vset.pattern.permute.xlu0 0
        %344 = vperm.xlu0 %343, %v336
        %v345 = vpop.permute.xlu0 %344
        %vm347 = vcmask 261120
        %v349 = vsel %vm347, %v333, 0
        %v352 = vsel %vm347, %v334, 0
        %v355 = vsel %vm347, %v301, 0
        %v358 = vsel %vm347, %v302, 0
        %v361 = vsel %vm347, %v303, 0
        %v364 = vsel %vm347, %v304, 0
        %v367 = vsel %vm347, %v305, 0
        %v370 = vsel %vm347, %v306, 0
        %v373 = vsel %vm347, %v307, 0
        %v376 = vsel %vm347, %v308, 0
        %v379 = vsel %vm347, %v309, 0
        %v382 = vsel %vm347, %v310, 0
        %v385 = vsel %vm347, %v311, 0
        %v388 = vsel %vm347, %v312, 0
        %v391 = vsel %vm347, %v313, 0
        %v394 = vsel %vm347, %v314, 0
        %v397 = vsel %vm347, %v315, 0
        %v400 = vsel %vm347, %v316, 0
        %v403 = vsel %vm347, %v317, 0
        %v406 = vsel %vm347, %v318, 0
        %v409 = vsel %vm347, %v319, 0
        %v412 = vsel %vm347, %v320, 0
        %v415 = vsel %vm347, %v321, 0
        %v418 = vsel %vm347, %v322, 0
        %v421 = vsel %vm347, %v323, 0
        %v424 = vsel %vm347, %v324, 0
        %v427 = vsel %vm347, %v325, 0
        %v430 = vsel %vm347, %v326, 0
        %v433 = vsel %vm347, %v327, 0
        %v436 = vsel %vm347, %v328, 0
        %v439 = vsel %vm347, %v329, 0
        %v442 = vsel %vm347, %v330, 0
        %v445 = vsel %vm347, %v331, 0
        %v448 = vsel %vm347, %v332, 0
        %450 = vmatprep.subr.mxu0 0.0
        %451 = vmatpush1.xpose.msra.mxu0 %v355
        %452 = vmatprep.subr.mxu0 0.0
        %453 = vmatpush1.xpose.msra.mxu0 %v358
        %454 = vmatprep.subr.mxu0 0.0
        %455 = vmatpush1.xpose.msra.mxu0 %v361
        %456 = vmatprep.subr.mxu0 0.0
        %457 = vmatpush1.xpose.msra.mxu0 %v364
        %458 = vmatprep.subr.mxu0 0.0
        %459 = vmatpush1.xpose.msra.mxu0 %v367
        %460 = vmatprep.subr.mxu0 0.0
        %461 = vmatpush1.xpose.msra.mxu0 %v370
        %462 = vmatprep.subr.mxu0 0.0
        %463 = vmatpush1.xpose.msra.mxu0 %v373
        %464 = vmatprep.subr.mxu0 0.0
        %465 = vmatpush1.xpose.msra.mxu0 %v376
        %466 = vmatprep.subr.mxu0 0.0
        %467 = vmatpush1.xpose.msra.mxu0 %v379
        %468 = vmatprep.subr.mxu0 0.0
        %469 = vmatpush1.xpose.msra.mxu0 %v382
        %470 = vmatprep.subr.mxu0 0.0
        %471 = vmatpush1.xpose.msra.mxu0 %v385
        %472 = vmatprep.subr.mxu0 0.0
        %473 = vmatpush1.xpose.msra.mxu0 %v388
        %474 = vmatprep.subr.mxu0 0.0
        %475 = vmatpush1.xpose.msra.mxu0 %v391
        %476 = vmatprep.subr.mxu0 0.0
        %477 = vmatpush1.xpose.msra.mxu0 %v394
        %478 = vmatprep.subr.mxu0 0.0
        %479 = vmatpush1.xpose.msra.mxu0 %v397
        %480 = vmatprep.subr.mxu0 0.0
        %481 = vmatpush1.xpose.msra.mxu0 %v400
        %482 = vmatprep.subr.mxu0 0.0
        %483 = vmatpush1.xpose.msra.mxu0 %v403
        %484 = vmatprep.subr.mxu0 0.0
        %485 = vmatpush1.xpose.msra.mxu0 %v406
        %486 = vmatprep.subr.mxu0 0.0
        %487 = vmatpush1.xpose.msra.mxu0 %v409
        %488 = vmatprep.subr.mxu0 0.0
        %489 = vmatpush1.xpose.msra.mxu0 %v412
        %490 = vmatprep.subr.mxu0 0.0
        %491 = vmatpush1.xpose.msra.mxu0 %v415
        %492 = vmatprep.subr.mxu0 0.0
        %493 = vmatpush1.xpose.msra.mxu0 %v418
        %494 = vmatprep.subr.mxu0 0.0
        %495 = vmatpush1.xpose.msra.mxu0 %v421
        %496 = vmatprep.subr.mxu0 0.0
        %497 = vmatpush1.xpose.msra.mxu0 %v424
        %498 = vmatprep.subr.mxu0 0.0
        %499 = vmatpush1.xpose.msra.mxu0 %v427
        %500 = vmatprep.subr.mxu0 0.0
        %501 = vmatpush1.xpose.msra.mxu0 %v430
        %502 = vmatprep.subr.mxu0 0.0
        %503 = vmatpush1.xpose.msra.mxu0 %v433
        %504 = vmatprep.subr.mxu0 0.0
        %505 = vmatpush1.xpose.msra.mxu0 %v436
        %506 = vmatprep.subr.mxu0 0.0
        %507 = vmatpush1.xpose.msra.mxu0 %v439
        %508 = vmatprep.subr.mxu0 0.0
        %509 = vmatpush1.xpose.msra.mxu0 %v442
        %510 = vmatprep.subr.mxu0 0.0
        %511 = vmatpush1.xpose.msra.mxu0 %v445
        %512 = vmatprep.subr.mxu0 0.0
        %513 = vmatpush1.xpose.msra.mxu0 %v448
        %514 = vmatprep.mubr.f32.mxu0 0.0
        %515 = vmatmul.mubr.f32.gmra.mrb[0].mxu0 %v349
        %v516 = vpop.f32.mrb[0].mxu0
        %v517 = vadd.f32 %v340, %v516
        %v518 = vpop.f32.mrb[0].mxu0
        %v519 = vadd.f32 %v340, %v518
        %520 = vmatprep.mubr.f32.mxu0 0.0
        %521 = vmatmul.mubr.f32.gmra.mrb[0].mxu0 %v352
        %v522 = vpop.f32.mrb[0].mxu0
        %v523 = vadd.f32 %v345, %v522
        %v524 = vpop.f32.mrb[0].mxu0
        %v525 = vadd.f32 %v345, %v524
        %526 = vdwg.mxu0
        %v527 = vmax.f32 %v517, 0.0
        %v528 = vmax.f32 %v519, 0.0
        %v529 = vmax.f32 %v523, 0.0
        %v530 = vmax.f32 %v525, 0.0
        %v531 = vld [vmem:[%s3] sm:$0xff]
        %v532 = vld [vmem:[%s3 + $0x8] sm:$0xff]
        %v533 = vld [vmem:[%s3 + $0x10] sm:$0xff]
        %v534 = vld [vmem:[%s3 + $0x18] sm:$0xff]
        %v535 = vld [vmem:[%s4] sm:$0xff]
        %v536 = vld [vmem:[%s4 + $0x8] sm:$0xff]
        %v537 = vld [vmem:[%s4 + $0x10] sm:$0xff]
        %v538 = vld [vmem:[%s4 + $0x18] sm:$0xff]
        %540 = vset.pattern.permute.xlu0 0
        %541 = vperm.xlu0 %540, %v535
        %v542 = vpop.permute.xlu0 %541
        %545 = vset.pattern.permute.xlu0 0
        %546 = vperm.xlu0 %545, %v536
        %v547 = vpop.permute.xlu0 %546
        %550 = vset.pattern.permute.xlu0 0
        %551 = vperm.xlu0 %550, %v537
        %v552 = vpop.permute.xlu0 %551
        %555 = vset.pattern.permute.xlu0 0
        %556 = vperm.xlu0 %555, %v538
        %v557 = vpop.permute.xlu0 %556
        %vm559 = vcmask 130048
        %v561 = vsel %vm559, %v531, 0
        %v564 = vsel %vm559, %v532, 0
        %v567 = vsel %vm559, %v533, 0
        %v570 = vsel %vm559, %v534, 0
        %572 = vmatprep.subr.mxu0 %v528
        %573 = vmatpush1.msra.mxu0 %v527
        %574 = vmatprep.subr.mxu0 %v530
        %575 = vmatpush1.msra.mxu0 %v529
        %576 = vmatprep.subr.mxu0 0.0
        %577 = vmatpush1.msra.mxu0 0.0
        %578 = vmatprep.subr.mxu0 0.0
        %579 = vmatpush1.msra.mxu0 0.0
        %580 = vmatprep.subr.mxu0 0.0
        %581 = vmatpush1.msra.mxu0 0.0
        %582 = vmatprep.subr.mxu0 0.0
        %583 = vmatpush1.msra.mxu0 0.0
        %584 = vmatprep.subr.mxu0 0.0
        %585 = vmatpush1.msra.mxu0 0.0
        %586 = vmatprep.subr.mxu0 0.0
        %587 = vmatpush1.msra.mxu0 0.0
        %588 = vmatprep.subr.mxu0 0.0
        %589 = vmatpush1.msra.mxu0 0.0
        %590 = vmatprep.subr.mxu0 0.0
        %591 = vmatpush1.msra.mxu0 0.0
        %592 = vmatprep.subr.mxu0 0.0
        %593 = vmatpush1.msra.mxu0 0.0
        %594 = vmatprep.subr.mxu0 0.0
        %595 = vmatpush1.msra.mxu0 0.0
        %596 = vmatprep.subr.mxu0 0.0
        %597 = vmatpush1.msra.mxu0 0.0
        %598 = vmatprep.subr.mxu0 0.0
        %599 = vmatpush1.msra.mxu0 0.0
        %600 = vmatprep.subr.mxu0 0.0
        %601 = vmatpush1.msra.mxu0 0.0
        %602 = vmatprep.subr.mxu0 0.0
        %603 = vmatpush1.msra.mxu0 0.0
        %604 = vmatprep.subr.mxu0 0.0
        %605 = vmatpush1.msra.mxu0 0.0
        %606 = vmatprep.subr.mxu0 0.0
        %607 = vmatpush1.msra.mxu0 0.0
        %608 = vmatprep.subr.mxu0 0.0
        %609 = vmatpush1.msra.mxu0 0.0
        %610 = vmatprep.subr.mxu0 0.0
        %611 = vmatpush1.msra.mxu0 0.0
        %612 = vmatprep.subr.mxu0 0.0
        %613 = vmatpush1.msra.mxu0 0.0
        %614 = vmatprep.subr.mxu0 0.0
        %615 = vmatpush1.msra.mxu0 0.0
        %616 = vmatprep.subr.mxu0 0.0
        %617 = vmatpush1.msra.mxu0 0.0
        %618 = vmatprep.subr.mxu0 0.0
        %619 = vmatpush1.msra.mxu0 0.0
        %620 = vmatprep.subr.mxu0 0.0
        %621 = vmatpush1.msra.mxu0 0.0
        %622 = vmatprep.subr.mxu0 0.0
        %623 = vmatpush1.msra.mxu0 0.0
        %624 = vmatprep.subr.mxu0 0.0
        %625 = vmatpush1.msra.mxu0 0.0
        %626 = vmatprep.subr.mxu0 0.0
        %627 = vmatpush1.msra.mxu0 0.0
        %628 = vmatprep.subr.mxu0 0.0
        %629 = vmatpush1.msra.mxu0 0.0
        %630 = vmatprep.subr.mxu0 0.0
        %631 = vmatpush1.msra.mxu0 0.0
        %632 = vmatprep.subr.mxu0 0.0
        %633 = vmatpush1.msra.mxu0 0.0
        %634 = vmatprep.subr.mxu0 0.0
        %635 = vmatpush1.msra.mxu0 0.0
        %636 = vmatprep.mubr.f32.mxu0 0.0
        %637 = vmatmul.mubr.f32.gmra.mrb[0].mxu0 %v561
        %v638 = vpop.f32.mrb[0].mxu0
        %v639 = vadd.f32 %v542, %v638
        %v640 = vpop.f32.mrb[0].mxu0
        %v641 = vadd.f32 %v542, %v640
        %642 = vmatprep.mubr.f32.mxu0 0.0
        %643 = vmatmul.mubr.f32.gmra.mrb[0].mxu0 %v564
        %v644 = vpop.f32.mrb[0].mxu0
        %v645 = vadd.f32 %v547, %v644
        %v646 = vpop.f32.mrb[0].mxu0
        %v647 = vadd.f32 %v547, %v646
        %648 = vmatprep.mubr.f32.mxu0 0.0
        %649 = vmatmul.mubr.f32.gmra.mrb[0].mxu0 %v567
        %v650 = vpop.f32.mrb[0].mxu0
        %v651 = vadd.f32 %v552, %v650
        %v652 = vpop.f32.mrb[0].mxu0
        %v653 = vadd.f32 %v552, %v652
        %654 = vmatprep.mubr.f32.mxu0 0.0
        %655 = vmatmul.mubr.f32.gmra.mrb[0].mxu0 %v570
        %v656 = vpop.f32.mrb[0].mxu0
        %v657 = vadd.f32 %v557, %v656
        %v658 = vpop.f32.mrb[0].mxu0
        %v659 = vadd.f32 %v557, %v658
        %660 = vdwg.mxu0
        %v661 = vmax.f32 %v639, 0.0
        %v662 = vmax.f32 %v641, 0.0
        %v663 = vmax.f32 %v645, 0.0
        %v664 = vmax.f32 %v647, 0.0
        %v665 = vmax.f32 %v651, 0.0
        %v666 = vmax.f32 %v653, 0.0
        %v667 = vmax.f32 %v657, 0.0
        %v668 = vmax.f32 %v659, 0.0
        %v669 = vld [vmem:[%s5] sm:$0xff]
        %v670 = vld [vmem:[%s5 + $0x8] sm:$0xff]
        %v671 = vld [vmem:[%s5 + $0x10] sm:$0xff]
        %v672 = vld [vmem:[%s5 + $0x18] sm:$0xff]
        %674 = vset.pattern.permute.xlu0 0
        %675 = vperm.xlu0 %674, %v669
        %v676 = vpop.permute.xlu0 %675
        %679 = vset.pattern.permute.xlu0 0
        %680 = vperm.xlu0 %679, %v670
        %v681 = vpop.permute.xlu0 %680
        %684 = vset.pattern.permute.xlu0 0
        %685 = vperm.xlu0 %684, %v671
        %v686 = vpop.permute.xlu0 %685
        %689 = vset.pattern.permute.xlu0 0
        %690 = vperm.xlu0 %689, %v672
        %v691 = vpop.permute.xlu0 %690
        %v693 = vmul.f32 %v661, %v676
        %v694 = vmul.f32 %v662, %v676
        %v695 = vmul.f32 %v663, %v681
        %v696 = vmul.f32 %v664, %v681
        %v697 = vmul.f32 %v665, %v686
        %v698 = vmul.f32 %v666, %v686
        %v699 = vmul.f32 %v667, %v691
        %v700 = vmul.f32 %v668, %v691
        %v701 = vadd.f32 %v693, %v695
        %v702 = vadd.f32 %v701, %v697
        %v703 = vadd.f32 %v702, %v699
        %v704 = vrot.slane %v703, 4
        %v705 = vadd.f32 %v703, %v704
        %v706 = vrot.slane %v705, 2
        %v707 = vadd.f32 %v705, %v706
        %v708 = vrot.slane %v707, 1
        %v709 = vadd.f32 %v707, %v708
        %v710 = vadd.f32 %v694, %v696
        %v711 = vadd.f32 %v710, %v698
        %v712 = vadd.f32 %v711, %v700
        %v713 = vrot.slane %v712, 4
        %v714 = vadd.f32 %v712, %v713
        %v715 = vrot.slane %v714, 2
        %v716 = vadd.f32 %v714, %v715
        %v717 = vrot.slane %v716, 1
        %v718 = vadd.f32 %v716, %v717
        %v719 = vld [vmem:[#allocation2] sm:$0x1]
        %721 = vset.pattern.permute.xlu0 0
        %722 = vperm.xlu0 %721, %v719
        %v723 = vpop.permute.xlu0 %722
        %v725 = vlaneseq
        %v726 = vshrl.u32 %v725, 7
        %v727 = vsub.s32 0, %v726
        %v728 = vrot.slane %v723, %v727
        %v729 = vadd.f32 %v709, %v728
        %v730 = vadd.f32 %v718, %v728
        %v731 = vmin.f32 %v729, 20.0
        %v732 = vmin.f32 %v730, 20.0
        %v733 = vmul.f32 %v731, 1.442695
        %v734 = vpow.pop %v733
        %v735 = vmul.f32 %v732, 1.442695
        %v736 = vpow.pop %v735
        %v737 = vadd.f32 %v734, 1.0
        %v738 = vlog2.pop %v737
        %v739 = vmul.f32 %v738, 0.6931472
        %v740 = vmul.f32 -0.5, %v734
        %v741 = vadd.f32 %v740, 1.0
        %v742 = vmul.f32 %v741, %v734
        %v743 = vand.u32 2147483647, %v734
        %vm744 = vcmp.lt.f32.partialorder %v743, 0.0004427343
        %v745 = vsel %vm744, %v742, %v739
        %v746 = vadd.f32 %v736, 1.0
        %v747 = vlog2.pop %v746
        %v748 = vmul.f32 %v747, 0.6931472
        %v749 = vmul.f32 -0.5, %v736
        %v750 = vadd.f32 %v749, 1.0
        %v751 = vmul.f32 %v750, %v736
        %v752 = vand.u32 2147483647, %v736
        %vm753 = vcmp.lt.f32.partialorder %v752, 0.0004427343
        %v754 = vsel %vm753, %v751, %v748
        %vm755 = vcmp.gt.f32.partialorder %v729, 20.0
        %vm756 = vcmp.gt.f32.partialorder %v730, 20.0
        %v757 = vsel %vm755, %v729, %v745
        %v758 = vsel %vm756, %v730, %v754
        %v761 = vcombine.low %v757, %v758
        %v763 = vunpack.c.l.s4 1966171168
        %v764 = vunpack.c.0.s8 %v763
        %v765 = vlaneseq
        %v766 = vshrl.u32 %v765, 7
        %v767 = vsub.s32 %v764, %v766
        %v768 = vrot.slane %v761, %v767
        %v770 = vunpack.c.l.s4 1966171168
        %v771 = vunpack.c.0.s8 %v770
        %v772 = vlaneseq
        %v773 = vshrl.u32 %v772, 7
        %v774 = vsub.s32 %v771, %v773
        %v775 = vrot.slane %v768, %v774
        %v777 = vlaneseq
        %vm778 = vcmp.ge.s32.totalorder %v777, 0
        %vm779 = vcmp.lt.s32.totalorder %v777, 256
        %vm780 = vmand %vm778, %vm779
        %781 = vst.msk [vmem:[%s286] sm:$0x3] %vm780, %v775
        %s782 = sand.u32 %s183, 1
        %s783 = scalar_lea.sflag [#allocation4], %s782
        %s784 = sand.u32 %s183, 1
        %s785 = smul.addr %s784, 2
        %s786 = scalar_lea.vmem [#allocation3], %s785
        // Predicated region
        $region49: #{tpu_custom_call.1} parent=47 // pred_check
          %p787 = pneg %p193
        $region50: #{tpu_custom_call.1} parent=47 // pred_check_branch
          %789 = sbr.rel (%p787) target = $region52
        $region51: #{tpu_custom_call.1} parent=47 // pred_region
          %s791 = ssub.s32 32, 32
          %792 = vsyncadd %s783, %s791
          %s793 = smul.addr %s23, 2
          %s794 = smul.addr %s793, 16
          %s795 = scalar_lea.hbm %s7, %s794
          %s797 = sshll.u32 %s786, 4
          %s798 = int_to_ptr.vmem [resolvable:$true] %s797
          %800 = dma.vmem_to_hbm [thread:$0]  %s798, 32, %s795, %s783
        $region52: #{tpu_custom_call.1} parent=47 // pred_fallthru
          _
      $region48: #{tpu_custom_call.1} parent=5 // pred_fallthru
        _
      %p801 = scmp.le.s32.totalorder 2, %s18
      // Predicated region
      $region53: #{tpu_custom_call.1} parent=5 // pred_check
        %p802 = pneg %p801
      $region54: #{tpu_custom_call.1} parent=5 // pred_check_branch
        %804 = sbr.rel (%p802) target = $region56
      $region55: #{tpu_custom_call.1} parent=5 // pred_region
        %s805 = ssub.s32 %s18, 2
        // Predicated region
        $region57: #{tpu_custom_call.1} parent=55 // pred_check
          %p806 = pneg %p199
        $region58: #{tpu_custom_call.1} parent=55 // pred_check_branch
          %808 = sbr.rel (%p806) target = $region60
        $region59: #{tpu_custom_call.1} parent=55 // pred_region
          %s809 = sand.u32 %s184, 1
          %s810 = scalar_lea.sflag [#allocation4], %s809
          %s811 = sand.u32 %s184, 1
          %s812 = smul.addr %s811, 2
          %s813 = scalar_lea.vmem [#allocation3], %s812
          %814 = dma.done %s810, 32
        $region60: #{tpu_custom_call.1} parent=55 // pred_fallthru
          _
      $region56: #{tpu_custom_call.1} parent=5 // pred_fallthru
        _
    $region6: #{tpu_custom_call.1} parent=1 // loop_footer
      %s22 = sadd.s32 1, %s18
    $region7: #{tpu_custom_call.1} parent=1 // loop_footer_branch
      %17 = sbr.rel target = $region3
    $region8: #{tpu_custom_call.1} parent=1 // loop_exit
      _
    %815 = vsyncpa [#allocation4], 1
    %s816 = scalar_lea.sflag [#allocation4], 1
    %817 = vsyncpa %s816, 1

</llo_original>
